<compile_context>
chip_gen: v7x
topology: tpu7x:2x2x1
jax: 0.10.0
libtpu: 0.0.40
codegen_flags: <defaults>
</compile_context>

<pallas_src>
import jax
import jax.numpy as jnp
from jax.experimental import pallas as pl
from jax.experimental.pallas import tpu as pltpu

# ---------------- config (small demo shapes consistent with the module) ----------
EMBED_DIM = 32
NUM_HEADS = 2
EXPAND_RATIO = 3
RPE_EMBEDDING = 64        # rpe_embedding (module default 512; shrunk for the demo)
RPE_LAYERS = 3
BATCH = 2
SEQ = 16                  # small, but > SEQ_TILE so the scratch-carry path is exercised
SEQ_TILE = 8

D1 = (EXPAND_RATIO * EMBED_DIM) // NUM_HEADS * NUM_HEADS      # 96
HEAD_DIM = D1 // NUM_HEADS                                    # 48
EPS = 1e-8

LANE = 128
D1P = ((D1 + LANE - 1) // LANE) * LANE                        # 96  -> 128
RPE_P = ((RPE_EMBEDDING + LANE - 1) // LANE) * LANE           # 64  -> 128

# dtype of the RPE coefficient table and the v scratch used by the Toeplitz mix.
# float32 keeps the demo exactly comparable to the f32 reference; on v6e/v7x set
# to jnp.bfloat16 (the accumulator stays f32) to halve VMEM residency / vld
# bytes and ~double VALU throughput of the binding mul/add.
MIX_DTYPE = jnp.float32


def _simple_rms_norm(x, d):
    # SimpleRMSNorm: x / (||x||_2 * d^{-1/2} + eps), no learnable params.
    norm = jnp.sqrt(jnp.sum(x * x, axis=-1, keepdims=True))
    return x / (norm * (float(d) ** -0.5) + EPS)


# ---------------- Pallas kernel 1: RPE coefficient MLP ---------------------------
# Produces the Toeplitz coefficients for every relative offset.  Row r of the
# output corresponds to relative offset (r - (n-1)); the last row (offset n) is
# padding and never read.  Runs ONCE per (params, n) — hoisted out of the hot
# path — and is tiled over row blocks so activations stay O(tile) in VMEM even
# at realistic (rpe_embedding, n).
def compute_rpe_coeffs(params, n):
    m = 2 * n
    rti = min(m, 512)
    while m % rti:            # n % 8 == 0  =>  m % 8 == 0, so this terminates at >= 8
        rti -= 8

    def rpe_kernel(w0_ref, b0_ref, lw_ref, lb_ref, wo_ref, bo_ref, out_ref):
        r0 = pl.program_id(0) * rti
        # par_type=1: raw relative offsets, built in-kernel (no DMA of offsets).
        row = jax.lax.broadcasted_iota(jnp.int32, (rti, RPE_P), 0) + r0
        rel = (row - (n - 1)).astype(jnp.float32)
        # pos_proj: Linear(1 -> rpe_dim); K=1 matmul expressed as broadcast multiply.
        x = rel * w0_ref[...] + b0_ref[...]                          # (rti, RPE_P)
        for i in range(RPE_LAYERS):                                  # residual=False
            x = jnp.maximum(_simple_rms_norm(x, RPE_EMBEDDING), 0.0)  # rpe_act='relu'
            x = jnp.dot(x, lw_ref[i], preferred_element_type=jnp.float32) + lb_ref[i]
        x = jnp.maximum(_simple_rms_norm(x, RPE_EMBEDDING), 0.0)
        out = (jnp.dot(x, wo_ref[...], preferred_element_type=jnp.float32)
               + bo_ref[...])                                        # act_type='none'
        out_ref[...] = out.astype(out_ref.dtype)

    return pl.pallas_call(
        rpe_kernel,
        out_shape=jax.ShapeDtypeStruct((m, D1P), MIX_DTYPE),
        grid=(m // rti,),
        in_specs=[pl.BlockSpec(memory_space=pltpu.MemorySpace.VMEM)] * 6,
        out_specs=pl.BlockSpec((rti, D1P), lambda r: (r, 0)),
    )(params["rpe_w0_p"], params["rpe_b0_p"], params["rpe_lw_p"],
      params["rpe_lb_p"], params["rpe_wout_p"], params["rpe_bout_p"])


# ---------------- Pallas kernel 2: main GTU hot path ------------------------------
# Grid = (batch, seq row-tiles).  At the first seq tile of each batch element the
# whole-sequence v = silu(x @ Wv + bv) is computed once and kept in VMEM scratch;
# every tile then does a small per-tile u projection, a j-accumulated per-channel
# Toeplitz mix (no (n, n, d1) tensor, VPU mul/add only, bounded unroll), gating,
# and the output projection straight into a (ti, embed) output block.
def gtu_kernel(x_ref, wu_ref, bu_ref, wv_ref, bv_ref, coeff_ref, wo_ref, bo_ref,
               o_ref, v_s):
    n = x_ref.shape[0]
    ti = o_ref.shape[0]
    i0 = pl.multiple_of(pl.program_id(1) * ti, ti)

    # Whole-sequence v projection: once per batch element, carried across seq
    # tiles in the persistent VMEM scratch (requires "arbitrary" on the seq axis).
    @pl.when(pl.program_id(1) == 0)
    def _():
        xs = x_ref[...]                                              # (n, E)
        v = jnp.dot(xs, wv_ref[...], preferred_element_type=jnp.float32) + bv_ref[...]
        v = v * jax.nn.sigmoid(v)                                    # silu
        v_s[...] = v.astype(v_s.dtype)

    # u projection only for this tile's rows (no full-seq u scratch / recompute).
    xt = x_ref[pl.ds(i0, ti), :]                                     # (ti, E)
    u = jnp.dot(xt, wu_ref[...], preferred_element_type=jnp.float32) + bu_ref[...]
    u = u * jax.nn.sigmoid(u)                                        # (ti, D1P)

    # Per-channel Toeplitz mix along the sequence axis, accumulated over j:
    #   acc[li, c] += coeff[(i0 + li) - j + (n - 1), c] * v[j, c]
    # Bounded unroll keeps code size / vreg pressure independent of n.
    # (Further micro-opts per review — stride-0 sublane-broadcast v loads and
    # 8-aligned coeff superblocks rotated on the XLU — left for a later pass.)
    def body(j, acc):
        t = coeff_ref[pl.ds(i0 + (n - 1) - j, ti), :]                # (ti, D1P)
        vj = v_s[pl.ds(j, 1), :]                                     # (1, D1P) bcast
        return acc + (t * vj).astype(jnp.float32)

    acc = jax.lax.fori_loop(0, n, body,
                            jnp.zeros((ti, D1P), jnp.float32), unroll=8)

    g = u * acc                                                      # gate
    o_ref[...] = (jnp.dot(g, wo_ref[...], preferred_element_type=jnp.float32)
                  + bo_ref[...])                                     # (ti, E)


def _vmem_limit_bytes(n, ti):
    """Scoped-VMEM budget derived from the actual shapes (with headroom)."""
    f32 = 4
    mix = jnp.dtype(MIX_DTYPE).itemsize
    est = 0
    est += 2 * n * EMBED_DIM * f32                     # x block (double buffered)
    est += 2 * ti * EMBED_DIM * f32                    # out block (double buffered)
    est += (2 * n) * D1P * mix                         # coeff table (single copy)
    est += n * D1P * mix                               # v scratch
    est += (2 * EMBED_DIM * D1P + 2 * D1P + D1P * EMBED_DIM + EMBED_DIM) * f32  # weights
    est += n * D1P * f32 + 3 * ti * D1P * f32          # in-kernel temporaries
    return int(min(64 << 20, max(8 << 20, 2 * est)))


def gtu_forward(x, params, coeffs=None, seq_tile=None):
    b, n, e = x.shape
    assert e == EMBED_DIM and n % 8 == 0
    if coeffs is None:
        # Depends only on (params, n) -> compute once / cache across forward calls.
        coeffs = compute_rpe_coeffs(params, n)                       # (2n, D1P)

    ti = seq_tile if seq_tile is not None else min(n, 128)
    assert n % ti == 0 and ti % 8 == 0

    # Grid-invariant operands: whole-array VMEM residents (single copy, no
    # double buffering -> half the footprint of a blocked/default spec).
    # TODO(synk): for very long sequences on v7x (64 MiB VMEM), stream coeffs/v
    # in j-chunks from HBM instead of holding the full tables resident.
    vmem_res = pl.BlockSpec(memory_space=pltpu.MemorySpace.VMEM)

    return pl.pallas_call(
        gtu_kernel,
        out_shape=jax.ShapeDtypeStruct((b, n, e), jnp.float32),
        grid=(b, n // ti),
        in_specs=[
            pl.BlockSpec((None, n, e), lambda bi, ii: (bi, 0, 0)),   # x, full seq
            vmem_res,                                                # Wu
            vmem_res,                                                # bu
            vmem_res,                                                # Wv
            vmem_res,                                                # bv
            vmem_res,                                                # rpe coeffs
            vmem_res,                                                # Wo
            vmem_res,                                                # bo
        ],
        out_specs=pl.BlockSpec((None, ti, e), lambda bi, ii: (bi, ii, 0)),
        scratch_shapes=[pltpu.VMEM((n, D1P), MIX_DTYPE)],            # v, whole seq
        compiler_params=pltpu.CompilerParams(
            # batch: megacore-parallel; seq tiles: sequential so the v scratch
            # written at the first tile is valid for the later tiles.
            dimension_semantics=("parallel", "arbitrary"),
            vmem_limit_bytes=_vmem_limit_bytes(n, ti),
        ),
    )(x, params["wu_p"], params["bu_p"], params["wv_p"], params["bv_p"],
      coeffs, params["wo_p"], params["bo_p"])


# ---------------- deterministic parameter init (synthetic, no checkpoint) ---------
def init_params(key):
    ks = jax.random.split(key, 16)

    def lin(k, fan_in, fan_out):
        kw, kb = jax.random.split(k)
        w = jax.random.normal(kw, (fan_in, fan_out), jnp.float32) / jnp.sqrt(float(fan_in))
        b = 0.01 * jax.random.normal(kb, (1, fan_out), jnp.float32)
        return w, b

    p = {}
    p["wu"], p["bu"] = lin(ks[0], EMBED_DIM, D1)                  # u_proj
    p["wv"], p["bv"] = lin(ks[1], EMBED_DIM, D1)                  # v_proj
    p["wo"], p["bo"] = lin(ks[2], D1, EMBED_DIM)                  # o
    p["rpe_w0"], p["rpe_b0"] = lin(ks[3], 1, RPE_EMBEDDING)       # rpe.pos_proj
    lw, lb = [], []
    for i in range(RPE_LAYERS):
        w, b = lin(ks[4 + i], RPE_EMBEDDING, RPE_EMBEDDING)
        lw.append(w)
        lb.append(b)
    p["rpe_lw"] = jnp.stack(lw)                                   # (L, P, P)
    p["rpe_lb"] = jnp.stack(lb)                                   # (L, 1, P)
    p["rpe_wout"], p["rpe_bout"] = lin(ks[8], RPE_EMBEDDING, D1)  # rpe.out
    return p


def pad_params(p):
    """Lane-pad weights for the TPU kernels (zero padding is mathematically exact)."""
    q = dict(p)
    q["wu_p"] = jnp.zeros((EMBED_DIM, D1P), jnp.float32).at[:, :D1].set(p["wu"])
    q["bu_p"] = jnp.zeros((1, D1P), jnp.float32).at[:, :D1].set(p["bu"])
    q["wv_p"] = jnp.zeros((EMBED_DIM, D1P), jnp.float32).at[:, :D1].set(p["wv"])
    q["bv_p"] = jnp.zeros((1, D1P), jnp.float32).at[:, :D1].set(p["bv"])
    q["wo_p"] = jnp.zeros((D1P, EMBED_DIM), jnp.float32).at[:D1, :].set(p["wo"])
    q["bo_p"] = p["bo"]                                           # (1, E), unpadded
    q["rpe_w0_p"] = (jnp.zeros((1, RPE_P), jnp.float32)
                     .at[:, :RPE_EMBEDDING].set(p["rpe_w0"]))
    q["rpe_b0_p"] = (jnp.zeros((1, RPE_P), jnp.float32)
                     .at[:, :RPE_EMBEDDING].set(p["rpe_b0"]))
    q["rpe_lw_p"] = (jnp.zeros((RPE_LAYERS, RPE_P, RPE_P), jnp.float32)
                     .at[:, :RPE_EMBEDDING, :RPE_EMBEDDING].set(p["rpe_lw"]))
    q["rpe_lb_p"] = (jnp.zeros((RPE_LAYERS, 1, RPE_P), jnp.float32)
                     .at[:, :, :RPE_EMBEDDING].set(p["rpe_lb"]))
    q["rpe_wout_p"] = (jnp.zeros((RPE_P, D1P), jnp.float32)
                       .at[:RPE_EMBEDDING, :D1].set(p["rpe_wout"]))
    q["rpe_bout_p"] = jnp.zeros((1, D1P), jnp.float32).at[:, :D1].set(p["rpe_bout"])
    return q


# ---------------- pure-JAX reference (for correctness check) ----------------------
def gtu_reference(x, p):
    HP = jax.lax.Precision.HIGHEST
    b, n, e = x.shape
    m = 2 * n - 1
    rel = jnp.arange(-(n - 1), n, dtype=jnp.float32).reshape(m, 1)
    h = rel * p["rpe_w0"] + p["rpe_b0"]
    for i in range(RPE_LAYERS):
        h = (jnp.dot(jnp.maximum(_simple_rms_norm(h, RPE_EMBEDDING), 0.0),
                     p["rpe_lw"][i], precision=HP) + p["rpe_lb"][i])
    coeffs = (jnp.dot(jnp.maximum(_simple_rms_norm(h, RPE_EMBEDDING), 0.0),
                      p["rpe_wout"], precision=HP) + p["rpe_bout"])
    idx = jnp.arange(n)[:, None] - jnp.arange(n)[None, :] + (n - 1)
    T = coeffs[idx]                                               # (n, n, d1)
    u = jax.nn.silu(jnp.dot(x, p["wu"], precision=HP) + p["bu"])
    v = jax.nn.silu(jnp.dot(x, p["wv"], precision=HP) + p["bv"])
    ov = jnp.einsum("ijc,bjc->bic", T, v, precision=HP)
    return jnp.dot(u * ov, p["wo"], precision=HP) + p["bo"]


if __name__ == "__main__":
    key = jax.random.PRNGKey(0)
    kx, kp = jax.random.split(key)
    x = jax.random.normal(kx, (BATCH, SEQ, EMBED_DIM), jnp.float32)
    params = pad_params(init_params(kp))

    # RPE coefficients depend only on (params, n): computed once, outside the
    # per-token hot path, and reused by the main kernel.
    coeffs = jax.block_until_ready(compute_rpe_coeffs(params, SEQ))

    # seq_tile < SEQ so the projection-hoist / scratch-carry path is exercised.
    out = jax.block_until_ready(gtu_forward(x, params, coeffs, seq_tile=SEQ_TILE))
    ref = jax.block_until_ready(gtu_reference(x, params))

    assert out.shape == (BATCH, SEQ, EMBED_DIM)
    max_diff = float(jnp.max(jnp.abs(out - ref)))
    assert jnp.allclose(out, ref, atol=2e-4, rtol=2e-4), f"max abs diff {max_diff}"
    print("KERNEL_OK")
</pallas_src>

<mosaic_0001>
module attributes {stable_mosaic.version = 11 : i64} {
  func.func @rpe_kernel(%arg0: i32, %arg1: memref<1x128xf32, #tpu.memory_space<vmem>>, %arg2: memref<1x128xf32, #tpu.memory_space<vmem>>, %arg3: memref<3x128x128xf32, #tpu.memory_space<vmem>>, %arg4: memref<3x1x128xf32, #tpu.memory_space<vmem>>, %arg5: memref<128x128xf32, #tpu.memory_space<vmem>>, %arg6: memref<1x128xf32, #tpu.memory_space<vmem>>, %arg7: memref<32x128xf32, #tpu.memory_space<vmem>>) attributes {dimension_semantics = [#tpu.dimension_semantics<arbitrary>], iteration_bounds = array<i64: 1>, scalar_prefetch = 0 : i64, scratch_operands = 0 : i64, tpu.core_type = #tpu.core_type<tc>, window_params = [{pipeline_mode = #tpu.pipeline_mode<synchronous>, transform_indices = @transform_0, window_bounds = array<i64: 1, 128>}, {pipeline_mode = #tpu.pipeline_mode<synchronous>, transform_indices = @transform_1, window_bounds = array<i64: 1, 128>}, {pipeline_mode = #tpu.pipeline_mode<synchronous>, transform_indices = @transform_2, window_bounds = array<i64: 3, 128, 128>}, {pipeline_mode = #tpu.pipeline_mode<synchronous>, transform_indices = @transform_3, window_bounds = array<i64: 3, 1, 128>}, {pipeline_mode = #tpu.pipeline_mode<synchronous>, transform_indices = @transform_4, window_bounds = array<i64: 128, 128>}, {pipeline_mode = #tpu.pipeline_mode<synchronous>, transform_indices = @transform_5, window_bounds = array<i64: 1, 128>}, {transform_indices = @transform_6, window_bounds = array<i64: 32, 128>}]} {
    %c32_i32 = arith.constant 32 : i32
    %0 = arith.muli %arg0, %c32_i32 : i32
    %1 = tpu.iota {dimensions = array<i32: 0>} : vector<32x128xi32>
    %2 = vector.broadcast %0 : i32 to vector<32x128xi32>
    %3 = arith.addi %1, %2 : vector<32x128xi32>
    %c15_i32 = arith.constant 15 : i32
    %4 = vector.broadcast %c15_i32 : i32 to vector<32x128xi32>
    %5 = arith.subi %3, %4 : vector<32x128xi32>
    %6 = arith.sitofp %5 : vector<32x128xi32> to vector<32x128xf32>
    %c0 = arith.constant 0 : index
    %c0_0 = arith.constant 0 : index
    %7 = vector.load %arg1[%c0, %c0_0] : memref<1x128xf32, #tpu.memory_space<vmem>>, vector<1x128xf32>
    %8 = vector.broadcast %7 : vector<1x128xf32> to vector<32x128xf32>
    %9 = arith.mulf %6, %8 : vector<32x128xf32>
    %c0_1 = arith.constant 0 : index
    %c0_2 = arith.constant 0 : index
    %10 = vector.load %arg2[%c0_1, %c0_2] : memref<1x128xf32, #tpu.memory_space<vmem>>, vector<1x128xf32>
    %11 = vector.broadcast %10 : vector<1x128xf32> to vector<32x128xf32>
    %12 = arith.addf %9, %11 : vector<32x128xf32>
    %13 = arith.mulf %12, %12 : vector<32x128xf32>
    %cst = arith.constant dense<0.000000e+00> : vector<32xf32>
    %14 = vector.multi_reduction <add>, %13, %cst [1] : vector<32x128xf32> to vector<32xf32>
    %15 = vector.shape_cast %14 : vector<32xf32> to vector<32x1xf32>
    %16 = math.sqrt %15 : vector<32x1xf32>
    %cst_3 = arith.constant 1.250000e-01 : f32
    %17 = vector.broadcast %cst_3 : f32 to vector<32x1xf32>
    %18 = arith.mulf %16, %17 : vector<32x1xf32>
    %cst_4 = arith.constant 9.99999993E-9 : f32
    %19 = vector.broadcast %cst_4 : f32 to vector<32x1xf32>
    %20 = arith.addf %18, %19 : vector<32x1xf32>
    %21 = vector.broadcast %20 : vector<32x1xf32> to vector<32x128xf32>
    %22 = arith.divf %12, %21 : vector<32x128xf32>
    %cst_5 = arith.constant 0.000000e+00 : f32
    %23 = vector.broadcast %cst_5 : f32 to vector<32x128xf32>
    %24 = arith.maximumf %22, %23 : vector<32x128xf32>
    %c0_6 = arith.constant 0 : index
    %c0_7 = arith.constant 0 : index
    %c0_8 = arith.constant 0 : index
    %25 = vector.load %arg3[%c0_6, %c0_7, %c0_8] : memref<3x128x128xf32, #tpu.memory_space<vmem>>, vector<1x128x128xf32>
    %26 = vector.shape_cast %25 : vector<1x128x128xf32> to vector<128x128xf32>
    %cst_9 = arith.constant dense<0.000000e+00> : vector<32x128xf32>
    %27 = tpu.matmul %24, %26, %cst_9 {dimension_numbers = #tpu.dot_dimension_numbers<[1], [0], [0], [1], [0, 0, 1, 1], [], []>} : vector<32x128xf32>, vector<128x128xf32>, vector<32x128xf32> -> vector<32x128xf32>
    %c0_10 = arith.constant 0 : index
    %c0_11 = arith.constant 0 : index
    %c0_12 = arith.constant 0 : index
    %28 = vector.load %arg4[%c0_10, %c0_11, %c0_12] : memref<3x1x128xf32, #tpu.memory_space<vmem>>, vector<1x1x128xf32>
    %29 = vector.shape_cast %28 : vector<1x1x128xf32> to vector<1x128xf32>
    %30 = vector.broadcast %29 : vector<1x128xf32> to vector<32x128xf32>
    %31 = arith.addf %27, %30 : vector<32x128xf32>
    %32 = arith.mulf %31, %31 : vector<32x128xf32>
    %cst_13 = arith.constant dense<0.000000e+00> : vector<32xf32>
    %33 = vector.multi_reduction <add>, %32, %cst_13 [1] : vector<32x128xf32> to vector<32xf32>
    %34 = vector.shape_cast %33 : vector<32xf32> to vector<32x1xf32>
    %35 = math.sqrt %34 : vector<32x1xf32>
    %cst_14 = arith.constant 1.250000e-01 : f32
    %36 = vector.broadcast %cst_14 : f32 to vector<32x1xf32>
    %37 = arith.mulf %35, %36 : vector<32x1xf32>
    %cst_15 = arith.constant 9.99999993E-9 : f32
    %38 = vector.broadcast %cst_15 : f32 to vector<32x1xf32>
    %39 = arith.addf %37, %38 : vector<32x1xf32>
    %40 = vector.broadcast %39 : vector<32x1xf32> to vector<32x128xf32>
    %41 = arith.divf %31, %40 : vector<32x128xf32>
    %cst_16 = arith.constant 0.000000e+00 : f32
    %42 = vector.broadcast %cst_16 : f32 to vector<32x128xf32>
    %43 = arith.maximumf %41, %42 : vector<32x128xf32>
    %c1 = arith.constant 1 : index
    %c0_17 = arith.constant 0 : index
    %c0_18 = arith.constant 0 : index
    %44 = vector.load %arg3[%c1, %c0_17, %c0_18] : memref<3x128x128xf32, #tpu.memory_space<vmem>>, vector<1x128x128xf32>
    %45 = vector.shape_cast %44 : vector<1x128x128xf32> to vector<128x128xf32>
    %cst_19 = arith.constant dense<0.000000e+00> : vector<32x128xf32>
    %46 = tpu.matmul %43, %45, %cst_19 {dimension_numbers = #tpu.dot_dimension_numbers<[1], [0], [0], [1], [0, 0, 1, 1], [], []>} : vector<32x128xf32>, vector<128x128xf32>, vector<32x128xf32> -> vector<32x128xf32>
    %c1_20 = arith.constant 1 : index
    %c0_21 = arith.constant 0 : index
    %c0_22 = arith.constant 0 : index
    %47 = vector.load %arg4[%c1_20, %c0_21, %c0_22] : memref<3x1x128xf32, #tpu.memory_space<vmem>>, vector<1x1x128xf32>
    %48 = vector.shape_cast %47 : vector<1x1x128xf32> to vector<1x128xf32>
    %49 = vector.broadcast %48 : vector<1x128xf32> to vector<32x128xf32>
    %50 = arith.addf %46, %49 : vector<32x128xf32>
    %51 = arith.mulf %50, %50 : vector<32x128xf32>
    %cst_23 = arith.constant dense<0.000000e+00> : vector<32xf32>
    %52 = vector.multi_reduction <add>, %51, %cst_23 [1] : vector<32x128xf32> to vector<32xf32>
    %53 = vector.shape_cast %52 : vector<32xf32> to vector<32x1xf32>
    %54 = math.sqrt %53 : vector<32x1xf32>
    %cst_24 = arith.constant 1.250000e-01 : f32
    %55 = vector.broadcast %cst_24 : f32 to vector<32x1xf32>
    %56 = arith.mulf %54, %55 : vector<32x1xf32>
    %cst_25 = arith.constant 9.99999993E-9 : f32
    %57 = vector.broadcast %cst_25 : f32 to vector<32x1xf32>
    %58 = arith.addf %56, %57 : vector<32x1xf32>
    %59 = vector.broadcast %58 : vector<32x1xf32> to vector<32x128xf32>
    %60 = arith.divf %50, %59 : vector<32x128xf32>
    %cst_26 = arith.constant 0.000000e+00 : f32
    %61 = vector.broadcast %cst_26 : f32 to vector<32x128xf32>
    %62 = arith.maximumf %60, %61 : vector<32x128xf32>
    %c2 = arith.constant 2 : index
    %c0_27 = arith.constant 0 : index
    %c0_28 = arith.constant 0 : index
    %63 = vector.load %arg3[%c2, %c0_27, %c0_28] : memref<3x128x128xf32, #tpu.memory_space<vmem>>, vector<1x128x128xf32>
    %64 = vector.shape_cast %63 : vector<1x128x128xf32> to vector<128x128xf32>
    %cst_29 = arith.constant dense<0.000000e+00> : vector<32x128xf32>
    %65 = tpu.matmul %62, %64, %cst_29 {dimension_numbers = #tpu.dot_dimension_numbers<[1], [0], [0], [1], [0, 0, 1, 1], [], []>} : vector<32x128xf32>, vector<128x128xf32>, vector<32x128xf32> -> vector<32x128xf32>
    %c2_30 = arith.constant 2 : index
    %c0_31 = arith.constant 0 : index
    %c0_32 = arith.constant 0 : index
    %66 = vector.load %arg4[%c2_30, %c0_31, %c0_32] : memref<3x1x128xf32, #tpu.memory_space<vmem>>, vector<1x1x128xf32>
    %67 = vector.shape_cast %66 : vector<1x1x128xf32> to vector<1x128xf32>
    %68 = vector.broadcast %67 : vector<1x128xf32> to vector<32x128xf32>
    %69 = arith.addf %65, %68 : vector<32x128xf32>
    %70 = arith.mulf %69, %69 : vector<32x128xf32>
    %cst_33 = arith.constant dense<0.000000e+00> : vector<32xf32>
    %71 = vector.multi_reduction <add>, %70, %cst_33 [1] : vector<32x128xf32> to vector<32xf32>
    %72 = vector.shape_cast %71 : vector<32xf32> to vector<32x1xf32>
    %73 = math.sqrt %72 : vector<32x1xf32>
    %cst_34 = arith.constant 1.250000e-01 : f32
    %74 = vector.broadcast %cst_34 : f32 to vector<32x1xf32>
    %75 = arith.mulf %73, %74 : vector<32x1xf32>
    %cst_35 = arith.constant 9.99999993E-9 : f32
    %76 = vector.broadcast %cst_35 : f32 to vector<32x1xf32>
    %77 = arith.addf %75, %76 : vector<32x1xf32>
    %78 = vector.broadcast %77 : vector<32x1xf32> to vector<32x128xf32>
    %79 = arith.divf %69, %78 : vector<32x128xf32>
    %cst_36 = arith.constant 0.000000e+00 : f32
    %80 = vector.broadcast %cst_36 : f32 to vector<32x128xf32>
    %81 = arith.maximumf %79, %80 : vector<32x128xf32>
    %c0_37 = arith.constant 0 : index
    %c0_38 = arith.constant 0 : index
    %82 = vector.load %arg5[%c0_37, %c0_38] : memref<128x128xf32, #tpu.memory_space<vmem>>, vector<128x128xf32>
    %cst_39 = arith.constant dense<0.000000e+00> : vector<32x128xf32>
    %83 = tpu.matmul %81, %82, %cst_39 {dimension_numbers = #tpu.dot_dimension_numbers<[1], [0], [0], [1], [0, 0, 1, 1], [], []>} : vector<32x128xf32>, vector<128x128xf32>, vector<32x128xf32> -> vector<32x128xf32>
    %c0_40 = arith.constant 0 : index
    %c0_41 = arith.constant 0 : index
    %84 = vector.load %arg6[%c0_40, %c0_41] : memref<1x128xf32, #tpu.memory_space<vmem>>, vector<1x128xf32>
    %85 = vector.broadcast %84 : vector<1x128xf32> to vector<32x128xf32>
    %86 = arith.addf %83, %85 : vector<32x128xf32>
    %c0_42 = arith.constant 0 : index
    %c0_43 = arith.constant 0 : index
    %87 = vector.load %arg7[%c0_42, %c0_43] : memref<32x128xf32, #tpu.memory_space<vmem>>, vector<32x128xf32>
    tpu.vector_store %arg7[%c0_42, %c0_43], %86 {strides = array<i32>} : memref<32x128xf32, #tpu.memory_space<vmem>>, vector<32x128xf32>,
    return
  }
  func.func @transform_0(%arg0: i32) -> (i32, i32) {
    %c0_i32 = arith.constant 0 : i32
    %c0_i32_0 = arith.constant 0 : i32
    %c0_i32_1 = arith.constant 0 : i32
    return %c0_i32, %c0_i32_0 : i32, i32
  }
  func.func @transform_1(%arg0: i32) -> (i32, i32) {
    %c0_i32 = arith.constant 0 : i32
    %c0_i32_0 = arith.constant 0 : i32
    %c0_i32_1 = arith.constant 0 : i32
    return %c0_i32, %c0_i32_0 : i32, i32
  }
  func.func @transform_2(%arg0: i32) -> (i32, i32, i32) {
    %c0_i32 = arith.constant 0 : i32
    %c0_i32_0 = arith.constant 0 : i32
    %c0_i32_1 = arith.constant 0 : i32
    %c0_i32_2 = arith.constant 0 : i32
    return %c0_i32, %c0_i32_0, %c0_i32_1 : i32, i32, i32
  }
  func.func @transform_3(%arg0: i32) -> (i32, i32, i32) {
    %c0_i32 = arith.constant 0 : i32
    %c0_i32_0 = arith.constant 0 : i32
    %c0_i32_1 = arith.constant 0 : i32
    %c0_i32_2 = arith.constant 0 : i32
    return %c0_i32, %c0_i32_0, %c0_i32_1 : i32, i32, i32
  }
  func.func @transform_4(%arg0: i32) -> (i32, i32) {
    %c0_i32 = arith.constant 0 : i32
    %c0_i32_0 = arith.constant 0 : i32
    %c0_i32_1 = arith.constant 0 : i32
    return %c0_i32, %c0_i32_0 : i32, i32
  }
  func.func @transform_5(%arg0: i32) -> (i32, i32) {
    %c0_i32 = arith.constant 0 : i32
    %c0_i32_0 = arith.constant 0 : i32
    %c0_i32_1 = arith.constant 0 : i32
    return %c0_i32, %c0_i32_0 : i32, i32
  }
  func.func @transform_6(%arg0: i32) -> (i32, i32) {
    %c0_i32 = arith.constant 0 : i32
    %c0_i32_0 = arith.constant 0 : i32
    return %arg0, %c0_i32 : i32, i32
  }
}

</mosaic_0001>

<llo_original>
// kernel: tpu_custom_call.1
$region0: #{tpu_custom_call.1}
  #allocation0 [shape = 'u32[]', space=smem, size = 0x4, offset = 0x4, fixed_abs, tag = 'smem constant byte address 0x4 - core index']
  #allocation1 [shape = 'u32[144,128]{1,0:T(1,128)}', space=vmem, size = 0x12000, scoped, tag = 'internal scratch']
  %s0 = inlined_call_operand.hbm [shape: f32[1,128], index: 0, kind: input, shape index: {}]
  %s1 = inlined_call_operand.vmem [shape: f32[1,128], index: 1, kind: input, shape index: {}]
  %s2 = inlined_call_operand.hbm [shape: f32[3,128,128], index: 2, kind: input, shape index: {}]
  %s3 = inlined_call_operand.vmem [shape: f32[3,1,128], index: 3, kind: input, shape index: {}]
  %s4 = inlined_call_operand.hbm [shape: f32[128,128], index: 4, kind: input, shape index: {}]
  %s5 = inlined_call_operand.vmem [shape: f32[1,128], index: 5, kind: input, shape index: {}]
  %s6 = inlined_call_operand.hbm [shape: f32[32,128], index: 6, kind: output, shape index: {}]
  %s7 = sld [smem:[#allocation0]]
  $region46: #{tpu_custom_call.1} parent=0
    _
  %s9 = ssub.s32 1, %s7
  %s10 = scalar_select 0, %s9, %s7
  $region1: #{tpu_custom_call.1} parent=0
    #allocation2 [shape = 'u8[512]{0}', space=vmem, size = 0x400, scoped, tag = 'input window, operand 0, single buffered']
    #allocation3 [shape = 's32[1]{0}', space=sflag, size = 0x4, scoped, tag = 'scoped memory for tpu_custom_call.1']
    #allocation4 [shape = 's32[1]{0}', space=sflag, size = 0x4, scoped, tag = 'scoped memory for tpu_custom_call.1']
    #allocation5 [shape = 'u8[196608]{0}', space=vmem, size = 0x30000, scoped, tag = 'input window, operand 2, single buffered']
    #allocation6 [shape = 's32[1]{0}', space=sflag, size = 0x4, scoped, tag = 'scoped memory for tpu_custom_call.1']
    #allocation7 [shape = 'u8[65536]{0}', space=vmem, size = 0x10000, scoped, tag = 'input window, operand 4, single buffered']
    #allocation8 [shape = 'u8[16384]{0}', space=vmem, size = 0x4000, scoped, tag = 'output window, operand 0, single buffered']
    %11 = vsyncpa [#allocation3], 0
    %12 = vsyncpa [#allocation6], 0
    %13 = vsyncpa [#allocation4], 0
    // Predicated region
    $region2: #{tpu_custom_call.1} parent=1 // pred_check
      _
    $region3: #{tpu_custom_call.1} parent=1 // pred_check_branch
      %15 = sbr.rel (0) target = $region5
    $region4: #{tpu_custom_call.1} parent=1 // pred_region
      %s17 = ssub.s32 16, 16
      %18 = vsyncadd [#allocation3], %s17
      %s20 = sshll.u32 [#allocation2], 4
      %s21 = int_to_ptr.vmem [resolvable:$true] %s20
      %23 = dma.hbm_to_vmem [thread:$0]  %s0, 16, %s21, [#allocation3]
    $region5: #{tpu_custom_call.1} parent=1 // pred_fallthru
      _
    // Predicated region
    $region6: #{tpu_custom_call.1} parent=1 // pred_check
      _
    $region7: #{tpu_custom_call.1} parent=1 // pred_check_branch
      %25 = sbr.rel (0) target = $region9
    $region8: #{tpu_custom_call.1} parent=1 // pred_region
      _
    $region9: #{tpu_custom_call.1} parent=1 // pred_fallthru
      _
    // Predicated region
    $region10: #{tpu_custom_call.1} parent=1 // pred_check
      _
    $region11: #{tpu_custom_call.1} parent=1 // pred_check_branch
      %27 = sbr.rel (0) target = $region13
    $region12: #{tpu_custom_call.1} parent=1 // pred_region
      %s29 = ssub.s32 6144, 6144
      %30 = vsyncadd [#allocation6], %s29
      %s31 = sshll.u32 [#allocation5], 4
      %s32 = int_to_ptr.vmem [resolvable:$true] %s31
      %37 = dma.hbm_to_vmem [thread:$0]  %s2, 6144, %s32, [#allocation6], 128, 128, 8
    $region13: #{tpu_custom_call.1} parent=1 // pred_fallthru
      _
    // Predicated region
    $region14: #{tpu_custom_call.1} parent=1 // pred_check
      _
    $region15: #{tpu_custom_call.1} parent=1 // pred_check_branch
      %39 = sbr.rel (0) target = $region17
    $region16: #{tpu_custom_call.1} parent=1 // pred_region
      _
    $region17: #{tpu_custom_call.1} parent=1 // pred_fallthru
      _
    // Predicated region
    $region18: #{tpu_custom_call.1} parent=1 // pred_check
      _
    $region19: #{tpu_custom_call.1} parent=1 // pred_check_branch
      %41 = sbr.rel (0) target = $region21
    $region20: #{tpu_custom_call.1} parent=1 // pred_region
      %s43 = ssub.s32 2048, 2048
      %44 = vsyncadd [#allocation6], %s43
      %s45 = sshll.u32 [#allocation7], 4
      %s46 = int_to_ptr.vmem [resolvable:$true] %s45
      %51 = dma.hbm_to_vmem [thread:$0]  %s4, 2048, %s46, [#allocation6], 128, 128, 8
    $region21: #{tpu_custom_call.1} parent=1 // pred_fallthru
      _
    // Predicated region
    $region22: #{tpu_custom_call.1} parent=1 // pred_check
      _
    $region23: #{tpu_custom_call.1} parent=1 // pred_check_branch
      %53 = sbr.rel (0) target = $region25
    $region24: #{tpu_custom_call.1} parent=1 // pred_region
      _
    $region25: #{tpu_custom_call.1} parent=1 // pred_fallthru
      _
    // Predicated region
    $region26: #{tpu_custom_call.1} parent=1 // pred_check
      _
    $region27: #{tpu_custom_call.1} parent=1 // pred_check_branch
      %55 = sbr.rel (0) target = $region29
    $region28: #{tpu_custom_call.1} parent=1 // pred_region
      %56 = dma.done [#allocation3], 16
    $region29: #{tpu_custom_call.1} parent=1 // pred_fallthru
      _
    // Predicated region
    $region30: #{tpu_custom_call.1} parent=1 // pred_check
      _
    $region31: #{tpu_custom_call.1} parent=1 // pred_check_branch
      %58 = sbr.rel (0) target = $region33
    $region32: #{tpu_custom_call.1} parent=1 // pred_region
      %59 = dma.done [#allocation6], 6144
    $region33: #{tpu_custom_call.1} parent=1 // pred_fallthru
      _
    // Predicated region
    $region34: #{tpu_custom_call.1} parent=1 // pred_check
      _
    $region35: #{tpu_custom_call.1} parent=1 // pred_check_branch
      %61 = sbr.rel (0) target = $region37
    $region36: #{tpu_custom_call.1} parent=1 // pred_region
      %62 = dma.done [#allocation6], 2048
    $region37: #{tpu_custom_call.1} parent=1 // pred_fallthru
      _
    %s63 = smul.u32 0, 32
    %v64 = vlaneseq
    %v65 = vshrl.u32 %v64, 7
    %v66 = vadd.s32 %v65, 8
    %v67 = vadd.s32 %v65, 16
    %v68 = vadd.s32 %v65, 24
    %v69 = vstv %s63
    %v70 = vadd.s32 %v65, %v69
    %v71 = vadd.s32 %v66, %v69
    %v72 = vadd.s32 %v67, %v69
    %v73 = vadd.s32 %v68, %v69
    %v74 = vsub.s32 %v70, 15
    %v75 = vsub.s32 %v71, 15
    %v76 = vsub.s32 %v72, 15
    %v77 = vsub.s32 %v73, 15
    %v78 = vcvt.s32.f32 %v74
    %v79 = vcvt.s32.f32 %v75
    %v80 = vcvt.s32.f32 %v76
    %v81 = vcvt.s32.f32 %v77
    %v82 = vld [vmem:[#allocation2] sm:$0x1]
    %v84 = vlaneseq
    %v85 = vshrl.u32 %v84, 7
    %v86 = vsub.s32 0, %v85
    %v87 = vrot.slane %v82, %v86
    %v89 = vmul.f32 %v78, %v87
    %v90 = vmul.f32 %v79, %v87
    %v91 = vmul.f32 %v80, %v87
    %v92 = vmul.f32 %v81, %v87
    %v93 = vld [vmem:[%s1] sm:$0x1]
    %v95 = vlaneseq
    %v96 = vshrl.u32 %v95, 7
    %v97 = vsub.s32 0, %v96
    %v98 = vrot.slane %v93, %v97
    %v100 = vadd.f32 %v89, %v98
    %v101 = vadd.f32 %v90, %v98
    %v102 = vadd.f32 %v91, %v98
    %v103 = vadd.f32 %v92, %v98
    %v104 = vmul.f32 %v100, %v100
    %v105 = vmul.f32 %v101, %v101
    %v106 = vmul.f32 %v102, %v102
    %v107 = vmul.f32 %v103, %v103
    %108 = vadd.xlane.f32.xlu0 %v104
    %v109 = vpop.xlane.xlu0 %108
    %110 = vadd.xlane.f32.xlu0 %v105
    %v111 = vpop.xlane.xlu0 %110
    %112 = vadd.xlane.f32.xlu0 %v106
    %v113 = vpop.xlane.xlu0 %112
    %114 = vadd.xlane.f32.xlu0 %v107
    %v115 = vpop.xlane.xlu0 %114
    %v116 = vrsqrt.pop %v109
    %v117 = vmul.f32 %v109, %v116
    %vm118 = vcmp.eq.f32.partialorder %v109, inf
    %v119 = vsel %vm118, %v109, %v117
    %vm120 = vcmp.eq.f32.partialorder %v109, 0.0
    %v121 = vand.u32 %v109, 2147483648
    %v122 = vsel %vm120, %v121, %v119
    %v123 = vrsqrt.pop %v111
    %v124 = vmul.f32 %v111, %v123
    %vm125 = vcmp.eq.f32.partialorder %v111, inf
    %v126 = vsel %vm125, %v111, %v124
    %vm127 = vcmp.eq.f32.partialorder %v111, 0.0
    %v128 = vand.u32 %v111, 2147483648
    %v129 = vsel %vm127, %v128, %v126
    %v130 = vrsqrt.pop %v113
    %v131 = vmul.f32 %v113, %v130
    %vm132 = vcmp.eq.f32.partialorder %v113, inf
    %v133 = vsel %vm132, %v113, %v131
    %vm134 = vcmp.eq.f32.partialorder %v113, 0.0
    %v135 = vand.u32 %v113, 2147483648
    %v136 = vsel %vm134, %v135, %v133
    %v137 = vrsqrt.pop %v115
    %v138 = vmul.f32 %v115, %v137
    %vm139 = vcmp.eq.f32.partialorder %v115, inf
    %v140 = vsel %vm139, %v115, %v138
    %vm141 = vcmp.eq.f32.partialorder %v115, 0.0
    %v142 = vand.u32 %v115, 2147483648
    %v143 = vsel %vm141, %v142, %v140
    %v144 = vmul.f32 %v122, 0.125
    %v145 = vmul.f32 %v129, 0.125
    %v146 = vmul.f32 %v136, 0.125
    %v147 = vmul.f32 %v143, 0.125
    %v148 = vadd.f32 %v144, 1e-08
    %v149 = vadd.f32 %v145, 1e-08
    %v150 = vadd.f32 %v146, 1e-08
    %v151 = vadd.f32 %v147, 1e-08
    %v152 = vrcp.pop %v148
    %v153 = vmul.f32 %v100, %v152
    %v154 = vrcp.pop %v149
    %v155 = vmul.f32 %v101, %v154
    %v156 = vrcp.pop %v150
    %v157 = vmul.f32 %v102, %v156
    %v158 = vrcp.pop %v151
    %v159 = vmul.f32 %v103, %v158
    %v160 = vmax.f32 %v153, 0.0
    %v161 = vmax.f32 %v155, 0.0
    %v162 = vmax.f32 %v157, 0.0
    %v163 = vmax.f32 %v159, 0.0
    %v164 = vld [vmem:[#allocation5] sm:$0xff]
    %v165 = vld [vmem:[#allocation5 + $0x8] sm:$0xff]
    %v166 = vld [vmem:[#allocation5 + $0x10] sm:$0xff]
    %v167 = vld [vmem:[#allocation5 + $0x18] sm:$0xff]
    %v168 = vld [vmem:[#allocation5 + $0x20] sm:$0xff]
    %v169 = vld [vmem:[#allocation5 + $0x28] sm:$0xff]
    %v170 = vld [vmem:[#allocation5 + $0x30] sm:$0xff]
    %v171 = vld [vmem:[#allocation5 + $0x38] sm:$0xff]
    %v172 = vld [vmem:[#allocation5 + $0x40] sm:$0xff]
    %v173 = vld [vmem:[#allocation5 + $0x48] sm:$0xff]
    %v174 = vld [vmem:[#allocation5 + $0x50] sm:$0xff]
    %v175 = vld [vmem:[#allocation5 + $0x58] sm:$0xff]
    %v176 = vld [vmem:[#allocation5 + $0x60] sm:$0xff]
    %v177 = vld [vmem:[#allocation5 + $0x68] sm:$0xff]
    %v178 = vld [vmem:[#allocation5 + $0x70] sm:$0xff]
    %v179 = vld [vmem:[#allocation5 + $0x78] sm:$0xff]
    %v180 = vld [vmem:[%s3] sm:$0x1]
    %v182 = vlaneseq
    %v183 = vshrl.u32 %v182, 7
    %v184 = vsub.s32 0, %v183
    %v185 = vrot.slane %v180, %v184
    %187 = vmatprep.subr.mxu0 0.0
    %188 = vmatpush1.msra.mxu0 %v164
    %189 = vmatprep.subr.mxu0 0.0
    %190 = vmatpush1.msra.mxu0 %v165
    %191 = vmatprep.subr.mxu0 0.0
    %192 = vmatpush1.msra.mxu0 %v166
    %193 = vmatprep.subr.mxu0 0.0
    %194 = vmatpush1.msra.mxu0 %v167
    %195 = vmatprep.subr.mxu0 0.0
    %196 = vmatpush1.msra.mxu0 %v168
    %197 = vmatprep.subr.mxu0 0.0
    %198 = vmatpush1.msra.mxu0 %v169
    %199 = vmatprep.subr.mxu0 0.0
    %200 = vmatpush1.msra.mxu0 %v170
    %201 = vmatprep.subr.mxu0 0.0
    %202 = vmatpush1.msra.mxu0 %v171
    %203 = vmatprep.subr.mxu0 0.0
    %204 = vmatpush1.msra.mxu0 %v172
    %205 = vmatprep.subr.mxu0 0.0
    %206 = vmatpush1.msra.mxu0 %v173
    %207 = vmatprep.subr.mxu0 0.0
    %208 = vmatpush1.msra.mxu0 %v174
    %209 = vmatprep.subr.mxu0 0.0
    %210 = vmatpush1.msra.mxu0 %v175
    %211 = vmatprep.subr.mxu0 0.0
    %212 = vmatpush1.msra.mxu0 %v176
    %213 = vmatprep.subr.mxu0 0.0
    %214 = vmatpush1.msra.mxu0 %v177
    %215 = vmatprep.subr.mxu0 0.0
    %216 = vmatpush1.msra.mxu0 %v178
    %217 = vmatprep.subr.mxu0 0.0
    %218 = vmatpush1.msra.mxu0 %v179
    %219 = vmatprep.subr.mxu0 0.0
    %220 = vmatpush1.msra.mxu0 0.0
    %221 = vmatprep.subr.mxu0 0.0
    %222 = vmatpush1.msra.mxu0 0.0
    %223 = vmatprep.subr.mxu0 0.0
    %224 = vmatpush1.msra.mxu0 0.0
    %225 = vmatprep.subr.mxu0 0.0
    %226 = vmatpush1.msra.mxu0 0.0
    %227 = vmatprep.subr.mxu0 0.0
    %228 = vmatpush1.msra.mxu0 0.0
    %229 = vmatprep.subr.mxu0 0.0
    %230 = vmatpush1.msra.mxu0 0.0
    %231 = vmatprep.subr.mxu0 0.0
    %232 = vmatpush1.msra.mxu0 0.0
    %233 = vmatprep.subr.mxu0 0.0
    %234 = vmatpush1.msra.mxu0 0.0
    %235 = vmatprep.subr.mxu0 0.0
    %236 = vmatpush1.msra.mxu0 0.0
    %237 = vmatprep.subr.mxu0 0.0
    %238 = vmatpush1.msra.mxu0 0.0
    %239 = vmatprep.subr.mxu0 0.0
    %240 = vmatpush1.msra.mxu0 0.0
    %241 = vmatprep.subr.mxu0 0.0
    %242 = vmatpush1.msra.mxu0 0.0
    %243 = vmatprep.subr.mxu0 0.0
    %244 = vmatpush1.msra.mxu0 0.0
    %245 = vmatprep.subr.mxu0 0.0
    %246 = vmatpush1.msra.mxu0 0.0
    %247 = vmatprep.subr.mxu0 0.0
    %248 = vmatpush1.msra.mxu0 0.0
    %249 = vmatprep.subr.mxu0 0.0
    %250 = vmatpush1.msra.mxu0 0.0
    %251 = vmatprep.mubr.f32.mxu0 0.0
    %252 = vmatmul.mubr.f32.gmra.mrb[0].mxu0 %v160
    %v253 = vpop.f32.mrb[0].mxu0
    %v254 = vadd.f32 %v185, %v253
    %v255 = vpop.f32.mrb[0].mxu0
    %256 = vmatprep.mubr.f32.mxu0 0.0
    %257 = vmatmul.mubr.f32.gmra.mrb[0].mxu0 %v161
    %v258 = vpop.f32.mrb[0].mxu0
    %v259 = vadd.f32 %v185, %v258
    %v260 = vpop.f32.mrb[0].mxu0
    %261 = vmatprep.mubr.f32.mxu0 0.0
    %262 = vmatmul.mubr.f32.gmra.mrb[0].mxu0 %v162
    %v263 = vpop.f32.mrb[0].mxu0
    %v264 = vadd.f32 %v185, %v263
    %v265 = vpop.f32.mrb[0].mxu0
    %266 = vmatprep.mubr.f32.mxu0 0.0
    %267 = vmatmul.mubr.f32.gmra.mrb[0].mxu0 %v163
    %v268 = vpop.f32.mrb[0].mxu0
    %v269 = vadd.f32 %v185, %v268
    %v270 = vpop.f32.mrb[0].mxu0
    %271 = vdwg.mxu0
    %v272 = vmul.f32 %v254, %v254
    %v273 = vmul.f32 %v259, %v259
    %v274 = vmul.f32 %v264, %v264
    %v275 = vmul.f32 %v269, %v269
    %276 = vadd.xlane.f32.xlu0 %v272
    %v277 = vpop.xlane.xlu0 %276
    %278 = vadd.xlane.f32.xlu0 %v273
    %v279 = vpop.xlane.xlu0 %278
    %280 = vadd.xlane.f32.xlu0 %v274
    %v281 = vpop.xlane.xlu0 %280
    %282 = vadd.xlane.f32.xlu0 %v275
    %v283 = vpop.xlane.xlu0 %282
    %v284 = vrsqrt.pop %v277
    %v285 = vmul.f32 %v277, %v284
    %vm286 = vcmp.eq.f32.partialorder %v277, inf
    %v287 = vsel %vm286, %v277, %v285
    %vm288 = vcmp.eq.f32.partialorder %v277, 0.0
    %v289 = vand.u32 %v277, 2147483648
    %v290 = vsel %vm288, %v289, %v287
    %v291 = vrsqrt.pop %v279
    %v292 = vmul.f32 %v279, %v291
    %vm293 = vcmp.eq.f32.partialorder %v279, inf
    %v294 = vsel %vm293, %v279, %v292
    %vm295 = vcmp.eq.f32.partialorder %v279, 0.0
    %v296 = vand.u32 %v279, 2147483648
    %v297 = vsel %vm295, %v296, %v294
    %v298 = vrsqrt.pop %v281
    %v299 = vmul.f32 %v281, %v298
    %vm300 = vcmp.eq.f32.partialorder %v281, inf
    %v301 = vsel %vm300, %v281, %v299
    %vm302 = vcmp.eq.f32.partialorder %v281, 0.0
    %v303 = vand.u32 %v281, 2147483648
    %v304 = vsel %vm302, %v303, %v301
    %v305 = vrsqrt.pop %v283
    %v306 = vmul.f32 %v283, %v305
    %vm307 = vcmp.eq.f32.partialorder %v283, inf
    %v308 = vsel %vm307, %v283, %v306
    %vm309 = vcmp.eq.f32.partialorder %v283, 0.0
    %v310 = vand.u32 %v283, 2147483648
    %v311 = vsel %vm309, %v310, %v308
    %v312 = vmul.f32 %v290, 0.125
    %v313 = vmul.f32 %v297, 0.125
    %v314 = vmul.f32 %v304, 0.125
    %v315 = vmul.f32 %v311, 0.125
    %v316 = vadd.f32 %v312, 1e-08
    %v317 = vadd.f32 %v313, 1e-08
    %v318 = vadd.f32 %v314, 1e-08
    %v319 = vadd.f32 %v315, 1e-08
    %v320 = vrcp.pop %v316
    %v321 = vmul.f32 %v254, %v320
    %v322 = vrcp.pop %v317
    %v323 = vmul.f32 %v259, %v322
    %v324 = vrcp.pop %v318
    %v325 = vmul.f32 %v264, %v324
    %v326 = vrcp.pop %v319
    %v327 = vmul.f32 %v269, %v326
    %v328 = vmax.f32 %v321, 0.0
    %v329 = vmax.f32 %v323, 0.0
    %v330 = vmax.f32 %v325, 0.0
    %v331 = vmax.f32 %v327, 0.0
    %s332 = scalar_lea.vmem [#allocation5], 128
    %v333 = vld [vmem:[%s332] sm:$0xff]
    %v334 = vld [vmem:[%s332 + $0x8] sm:$0xff]
    %v335 = vld [vmem:[%s332 + $0x10] sm:$0xff]
    %v336 = vld [vmem:[%s332 + $0x18] sm:$0xff]
    %v337 = vld [vmem:[%s332 + $0x20] sm:$0xff]
    %v338 = vld [vmem:[%s332 + $0x28] sm:$0xff]
    %v339 = vld [vmem:[%s332 + $0x30] sm:$0xff]
    %v340 = vld [vmem:[%s332 + $0x38] sm:$0xff]
    %v341 = vld [vmem:[%s332 + $0x40] sm:$0xff]
    %v342 = vld [vmem:[%s332 + $0x48] sm:$0xff]
    %v343 = vld [vmem:[%s332 + $0x50] sm:$0xff]
    %v344 = vld [vmem:[%s332 + $0x58] sm:$0xff]
    %v345 = vld [vmem:[%s332 + $0x60] sm:$0xff]
    %v346 = vld [vmem:[%s332 + $0x68] sm:$0xff]
    %v347 = vld [vmem:[%s332 + $0x70] sm:$0xff]
    %v348 = vld [vmem:[%s332 + $0x78] sm:$0xff]
    %s349 = scalar_lea.vmem %s3, 1
    %v350 = vld [vmem:[%s349] sm:$0x1]
    %v352 = vlaneseq
    %v353 = vshrl.u32 %v352, 7
    %v354 = vsub.s32 0, %v353
    %v355 = vrot.slane %v350, %v354
    %357 = vmatprep.subr.mxu0 0.0
    %358 = vmatpush1.msra.mxu0 %v333
    %359 = vmatprep.subr.mxu0 0.0
    %360 = vmatpush1.msra.mxu0 %v334
    %361 = vmatprep.subr.mxu0 0.0
    %362 = vmatpush1.msra.mxu0 %v335
    %363 = vmatprep.subr.mxu0 0.0
    %364 = vmatpush1.msra.mxu0 %v336
    %365 = vmatprep.subr.mxu0 0.0
    %366 = vmatpush1.msra.mxu0 %v337
    %367 = vmatprep.subr.mxu0 0.0
    %368 = vmatpush1.msra.mxu0 %v338
    %369 = vmatprep.subr.mxu0 0.0
    %370 = vmatpush1.msra.mxu0 %v339
    %371 = vmatprep.subr.mxu0 0.0
    %372 = vmatpush1.msra.mxu0 %v340
    %373 = vmatprep.subr.mxu0 0.0
    %374 = vmatpush1.msra.mxu0 %v341
    %375 = vmatprep.subr.mxu0 0.0
    %376 = vmatpush1.msra.mxu0 %v342
    %377 = vmatprep.subr.mxu0 0.0
    %378 = vmatpush1.msra.mxu0 %v343
    %379 = vmatprep.subr.mxu0 0.0
    %380 = vmatpush1.msra.mxu0 %v344
    %381 = vmatprep.subr.mxu0 0.0
    %382 = vmatpush1.msra.mxu0 %v345
    %383 = vmatprep.subr.mxu0 0.0
    %384 = vmatpush1.msra.mxu0 %v346
    %385 = vmatprep.subr.mxu0 0.0
    %386 = vmatpush1.msra.mxu0 %v347
    %387 = vmatprep.subr.mxu0 0.0
    %388 = vmatpush1.msra.mxu0 %v348
    %389 = vmatprep.subr.mxu0 0.0
    %390 = vmatpush1.msra.mxu0 0.0
    %391 = vmatprep.subr.mxu0 0.0
    %392 = vmatpush1.msra.mxu0 0.0
    %393 = vmatprep.subr.mxu0 0.0
    %394 = vmatpush1.msra.mxu0 0.0
    %395 = vmatprep.subr.mxu0 0.0
    %396 = vmatpush1.msra.mxu0 0.0
    %397 = vmatprep.subr.mxu0 0.0
    %398 = vmatpush1.msra.mxu0 0.0
    %399 = vmatprep.subr.mxu0 0.0
    %400 = vmatpush1.msra.mxu0 0.0
    %401 = vmatprep.subr.mxu0 0.0
    %402 = vmatpush1.msra.mxu0 0.0
    %403 = vmatprep.subr.mxu0 0.0
    %404 = vmatpush1.msra.mxu0 0.0
    %405 = vmatprep.subr.mxu0 0.0
    %406 = vmatpush1.msra.mxu0 0.0
    %407 = vmatprep.subr.mxu0 0.0
    %408 = vmatpush1.msra.mxu0 0.0
    %409 = vmatprep.subr.mxu0 0.0
    %410 = vmatpush1.msra.mxu0 0.0
    %411 = vmatprep.subr.mxu0 0.0
    %412 = vmatpush1.msra.mxu0 0.0
    %413 = vmatprep.subr.mxu0 0.0
    %414 = vmatpush1.msra.mxu0 0.0
    %415 = vmatprep.subr.mxu0 0.0
    %416 = vmatpush1.msra.mxu0 0.0
    %417 = vmatprep.subr.mxu0 0.0
    %418 = vmatpush1.msra.mxu0 0.0
    %419 = vmatprep.subr.mxu0 0.0
    %420 = vmatpush1.msra.mxu0 0.0
    %421 = vmatprep.mubr.f32.mxu0 0.0
    %422 = vmatmul.mubr.f32.gmra.mrb[0].mxu0 %v328
    %v423 = vpop.f32.mrb[0].mxu0
    %v424 = vadd.f32 %v355, %v423
    %v425 = vpop.f32.mrb[0].mxu0
    %426 = vmatprep.mubr.f32.mxu0 0.0
    %427 = vmatmul.mubr.f32.gmra.mrb[0].mxu0 %v329
    %v428 = vpop.f32.mrb[0].mxu0
    %v429 = vadd.f32 %v355, %v428
    %v430 = vpop.f32.mrb[0].mxu0
    %431 = vmatprep.mubr.f32.mxu0 0.0
    %432 = vmatmul.mubr.f32.gmra.mrb[0].mxu0 %v330
    %v433 = vpop.f32.mrb[0].mxu0
    %v434 = vadd.f32 %v355, %v433
    %v435 = vpop.f32.mrb[0].mxu0
    %436 = vmatprep.mubr.f32.mxu0 0.0
    %437 = vmatmul.mubr.f32.gmra.mrb[0].mxu0 %v331
    %v438 = vpop.f32.mrb[0].mxu0
    %v439 = vadd.f32 %v355, %v438
    %v440 = vpop.f32.mrb[0].mxu0
    %441 = vdwg.mxu0
    %v442 = vmul.f32 %v424, %v424
    %v443 = vmul.f32 %v429, %v429
    %v444 = vmul.f32 %v434, %v434
    %v445 = vmul.f32 %v439, %v439
    %446 = vadd.xlane.f32.xlu0 %v442
    %v447 = vpop.xlane.xlu0 %446
    %448 = vadd.xlane.f32.xlu0 %v443
    %v449 = vpop.xlane.xlu0 %448
    %450 = vadd.xlane.f32.xlu0 %v444
    %v451 = vpop.xlane.xlu0 %450
    %452 = vadd.xlane.f32.xlu0 %v445
    %v453 = vpop.xlane.xlu0 %452
    %v454 = vrsqrt.pop %v447
    %v455 = vmul.f32 %v447, %v454
    %vm456 = vcmp.eq.f32.partialorder %v447, inf
    %v457 = vsel %vm456, %v447, %v455
    %vm458 = vcmp.eq.f32.partialorder %v447, 0.0
    %v459 = vand.u32 %v447, 2147483648
    %v460 = vsel %vm458, %v459, %v457
    %v461 = vrsqrt.pop %v449
    %v462 = vmul.f32 %v449, %v461
    %vm463 = vcmp.eq.f32.partialorder %v449, inf
    %v464 = vsel %vm463, %v449, %v462
    %vm465 = vcmp.eq.f32.partialorder %v449, 0.0
    %v466 = vand.u32 %v449, 2147483648
    %v467 = vsel %vm465, %v466, %v464
    %v468 = vrsqrt.pop %v451
    %v469 = vmul.f32 %v451, %v468
    %vm470 = vcmp.eq.f32.partialorder %v451, inf
    %v471 = vsel %vm470, %v451, %v469
    %vm472 = vcmp.eq.f32.partialorder %v451, 0.0
    %v473 = vand.u32 %v451, 2147483648
    %v474 = vsel %vm472, %v473, %v471
    %v475 = vrsqrt.pop %v453
    %v476 = vmul.f32 %v453, %v475
    %vm477 = vcmp.eq.f32.partialorder %v453, inf
    %v478 = vsel %vm477, %v453, %v476
    %vm479 = vcmp.eq.f32.partialorder %v453, 0.0
    %v480 = vand.u32 %v453, 2147483648
    %v481 = vsel %vm479, %v480, %v478
    %v482 = vmul.f32 %v460, 0.125
    %v483 = vmul.f32 %v467, 0.125
    %v484 = vmul.f32 %v474, 0.125
    %v485 = vmul.f32 %v481, 0.125
    %v486 = vadd.f32 %v482, 1e-08
    %v487 = vadd.f32 %v483, 1e-08
    %v488 = vadd.f32 %v484, 1e-08
    %v489 = vadd.f32 %v485, 1e-08
    %v490 = vrcp.pop %v486
    %v491 = vmul.f32 %v424, %v490
    %v492 = vrcp.pop %v487
    %v493 = vmul.f32 %v429, %v492
    %v494 = vrcp.pop %v488
    %v495 = vmul.f32 %v434, %v494
    %v496 = vrcp.pop %v489
    %v497 = vmul.f32 %v439, %v496
    %v498 = vmax.f32 %v491, 0.0
    %v499 = vmax.f32 %v493, 0.0
    %v500 = vmax.f32 %v495, 0.0
    %v501 = vmax.f32 %v497, 0.0
    %s502 = scalar_lea.vmem [#allocation5], 256
    %v503 = vld [vmem:[%s502] sm:$0xff]
    %v504 = vld [vmem:[%s502 + $0x8] sm:$0xff]
    %v505 = vld [vmem:[%s502 + $0x10] sm:$0xff]
    %v506 = vld [vmem:[%s502 + $0x18] sm:$0xff]
    %v507 = vld [vmem:[%s502 + $0x20] sm:$0xff]
    %v508 = vld [vmem:[%s502 + $0x28] sm:$0xff]
    %v509 = vld [vmem:[%s502 + $0x30] sm:$0xff]
    %v510 = vld [vmem:[%s502 + $0x38] sm:$0xff]
    %v511 = vld [vmem:[%s502 + $0x40] sm:$0xff]
    %v512 = vld [vmem:[%s502 + $0x48] sm:$0xff]
    %v513 = vld [vmem:[%s502 + $0x50] sm:$0xff]
    %v514 = vld [vmem:[%s502 + $0x58] sm:$0xff]
    %v515 = vld [vmem:[%s502 + $0x60] sm:$0xff]
    %v516 = vld [vmem:[%s502 + $0x68] sm:$0xff]
    %v517 = vld [vmem:[%s502 + $0x70] sm:$0xff]
    %v518 = vld [vmem:[%s502 + $0x78] sm:$0xff]
    %s519 = scalar_lea.vmem %s3, 2
    %v520 = vld [vmem:[%s519] sm:$0x1]
    %v522 = vlaneseq
    %v523 = vshrl.u32 %v522, 7
    %v524 = vsub.s32 0, %v523
    %v525 = vrot.slane %v520, %v524
    %527 = vmatprep.subr.mxu0 0.0
    %528 = vmatpush1.msra.mxu0 %v503
    %529 = vmatprep.subr.mxu0 0.0
    %530 = vmatpush1.msra.mxu0 %v504
    %531 = vmatprep.subr.mxu0 0.0
    %532 = vmatpush1.msra.mxu0 %v505
    %533 = vmatprep.subr.mxu0 0.0
    %534 = vmatpush1.msra.mxu0 %v506
    %535 = vmatprep.subr.mxu0 0.0
    %536 = vmatpush1.msra.mxu0 %v507
    %537 = vmatprep.subr.mxu0 0.0
    %538 = vmatpush1.msra.mxu0 %v508
    %539 = vmatprep.subr.mxu0 0.0
    %540 = vmatpush1.msra.mxu0 %v509
    %541 = vmatprep.subr.mxu0 0.0
    %542 = vmatpush1.msra.mxu0 %v510
    %543 = vmatprep.subr.mxu0 0.0
    %544 = vmatpush1.msra.mxu0 %v511
    %545 = vmatprep.subr.mxu0 0.0
    %546 = vmatpush1.msra.mxu0 %v512
    %547 = vmatprep.subr.mxu0 0.0
    %548 = vmatpush1.msra.mxu0 %v513
    %549 = vmatprep.subr.mxu0 0.0
    %550 = vmatpush1.msra.mxu0 %v514
    %551 = vmatprep.subr.mxu0 0.0
    %552 = vmatpush1.msra.mxu0 %v515
    %553 = vmatprep.subr.mxu0 0.0
    %554 = vmatpush1.msra.mxu0 %v516
    %555 = vmatprep.subr.mxu0 0.0
    %556 = vmatpush1.msra.mxu0 %v517
    %557 = vmatprep.subr.mxu0 0.0
    %558 = vmatpush1.msra.mxu0 %v518
    %559 = vmatprep.subr.mxu0 0.0
    %560 = vmatpush1.msra.mxu0 0.0
    %561 = vmatprep.subr.mxu0 0.0
    %562 = vmatpush1.msra.mxu0 0.0
    %563 = vmatprep.subr.mxu0 0.0
    %564 = vmatpush1.msra.mxu0 0.0
    %565 = vmatprep.subr.mxu0 0.0
    %566 = vmatpush1.msra.mxu0 0.0
    %567 = vmatprep.subr.mxu0 0.0
    %568 = vmatpush1.msra.mxu0 0.0
    %569 = vmatprep.subr.mxu0 0.0
    %570 = vmatpush1.msra.mxu0 0.0
    %571 = vmatprep.subr.mxu0 0.0
    %572 = vmatpush1.msra.mxu0 0.0
    %573 = vmatprep.subr.mxu0 0.0
    %574 = vmatpush1.msra.mxu0 0.0
    %575 = vmatprep.subr.mxu0 0.0
    %576 = vmatpush1.msra.mxu0 0.0
    %577 = vmatprep.subr.mxu0 0.0
    %578 = vmatpush1.msra.mxu0 0.0
    %579 = vmatprep.subr.mxu0 0.0
    %580 = vmatpush1.msra.mxu0 0.0
    %581 = vmatprep.subr.mxu0 0.0
    %582 = vmatpush1.msra.mxu0 0.0
    %583 = vmatprep.subr.mxu0 0.0
    %584 = vmatpush1.msra.mxu0 0.0
    %585 = vmatprep.subr.mxu0 0.0
    %586 = vmatpush1.msra.mxu0 0.0
    %587 = vmatprep.subr.mxu0 0.0
    %588 = vmatpush1.msra.mxu0 0.0
    %589 = vmatprep.subr.mxu0 0.0
    %590 = vmatpush1.msra.mxu0 0.0
    %591 = vmatprep.mubr.f32.mxu0 0.0
    %592 = vmatmul.mubr.f32.gmra.mrb[0].mxu0 %v498
    %v593 = vpop.f32.mrb[0].mxu0
    %v594 = vadd.f32 %v525, %v593
    %v595 = vpop.f32.mrb[0].mxu0
    %596 = vmatprep.mubr.f32.mxu0 0.0
    %597 = vmatmul.mubr.f32.gmra.mrb[0].mxu0 %v499
    %v598 = vpop.f32.mrb[0].mxu0
    %v599 = vadd.f32 %v525, %v598
    %v600 = vpop.f32.mrb[0].mxu0
    %601 = vmatprep.mubr.f32.mxu0 0.0
    %602 = vmatmul.mubr.f32.gmra.mrb[0].mxu0 %v500
    %v603 = vpop.f32.mrb[0].mxu0
    %v604 = vadd.f32 %v525, %v603
    %v605 = vpop.f32.mrb[0].mxu0
    %606 = vmatprep.mubr.f32.mxu0 0.0
    %607 = vmatmul.mubr.f32.gmra.mrb[0].mxu0 %v501
    %v608 = vpop.f32.mrb[0].mxu0
    %v609 = vadd.f32 %v525, %v608
    %v610 = vpop.f32.mrb[0].mxu0
    %611 = vdwg.mxu0
    %v612 = vmul.f32 %v594, %v594
    %v613 = vmul.f32 %v599, %v599
    %v614 = vmul.f32 %v604, %v604
    %v615 = vmul.f32 %v609, %v609
    %616 = vadd.xlane.f32.xlu0 %v612
    %v617 = vpop.xlane.xlu0 %616
    %618 = vadd.xlane.f32.xlu0 %v613
    %v619 = vpop.xlane.xlu0 %618
    %620 = vadd.xlane.f32.xlu0 %v614
    %v621 = vpop.xlane.xlu0 %620
    %622 = vadd.xlane.f32.xlu0 %v615
    %v623 = vpop.xlane.xlu0 %622
    %v624 = vrsqrt.pop %v617
    %v625 = vmul.f32 %v617, %v624
    %vm626 = vcmp.eq.f32.partialorder %v617, inf
    %v627 = vsel %vm626, %v617, %v625
    %vm628 = vcmp.eq.f32.partialorder %v617, 0.0
    %v629 = vand.u32 %v617, 2147483648
    %v630 = vsel %vm628, %v629, %v627
    %v631 = vrsqrt.pop %v619
    %v632 = vmul.f32 %v619, %v631
    %vm633 = vcmp.eq.f32.partialorder %v619, inf
    %v634 = vsel %vm633, %v619, %v632
    %vm635 = vcmp.eq.f32.partialorder %v619, 0.0
    %v636 = vand.u32 %v619, 2147483648
    %v637 = vsel %vm635, %v636, %v634
    %v638 = vrsqrt.pop %v621
    %v639 = vmul.f32 %v621, %v638
    %vm640 = vcmp.eq.f32.partialorder %v621, inf
    %v641 = vsel %vm640, %v621, %v639
    %vm642 = vcmp.eq.f32.partialorder %v621, 0.0
    %v643 = vand.u32 %v621, 2147483648
    %v644 = vsel %vm642, %v643, %v641
    %v645 = vrsqrt.pop %v623
    %v646 = vmul.f32 %v623, %v645
    %vm647 = vcmp.eq.f32.partialorder %v623, inf
    %v648 = vsel %vm647, %v623, %v646
    %vm649 = vcmp.eq.f32.partialorder %v623, 0.0
    %v650 = vand.u32 %v623, 2147483648
    %v651 = vsel %vm649, %v650, %v648
    %v652 = vmul.f32 %v630, 0.125
    %v653 = vmul.f32 %v637, 0.125
    %v654 = vmul.f32 %v644, 0.125
    %v655 = vmul.f32 %v651, 0.125
    %v656 = vadd.f32 %v652, 1e-08
    %v657 = vadd.f32 %v653, 1e-08
    %v658 = vadd.f32 %v654, 1e-08
    %v659 = vadd.f32 %v655, 1e-08
    %v660 = vrcp.pop %v656
    %v661 = vmul.f32 %v594, %v660
    %v662 = vrcp.pop %v657
    %v663 = vmul.f32 %v599, %v662
    %v664 = vrcp.pop %v658
    %v665 = vmul.f32 %v604, %v664
    %v666 = vrcp.pop %v659
    %v667 = vmul.f32 %v609, %v666
    %v668 = vmax.f32 %v661, 0.0
    %v669 = vmax.f32 %v663, 0.0
    %v670 = vmax.f32 %v665, 0.0
    %v671 = vmax.f32 %v667, 0.0
    %v672 = vld [vmem:[#allocation7] sm:$0xff]
    %v673 = vld [vmem:[#allocation7 + $0x8] sm:$0xff]
    %v674 = vld [vmem:[#allocation7 + $0x10] sm:$0xff]
    %v675 = vld [vmem:[#allocation7 + $0x18] sm:$0xff]
    %v676 = vld [vmem:[#allocation7 + $0x20] sm:$0xff]
    %v677 = vld [vmem:[#allocation7 + $0x28] sm:$0xff]
    %v678 = vld [vmem:[#allocation7 + $0x30] sm:$0xff]
    %v679 = vld [vmem:[#allocation7 + $0x38] sm:$0xff]
    %v680 = vld [vmem:[#allocation7 + $0x40] sm:$0xff]
    %v681 = vld [vmem:[#allocation7 + $0x48] sm:$0xff]
    %v682 = vld [vmem:[#allocation7 + $0x50] sm:$0xff]
    %v683 = vld [vmem:[#allocation7 + $0x58] sm:$0xff]
    %v684 = vld [vmem:[#allocation7 + $0x60] sm:$0xff]
    %v685 = vld [vmem:[#allocation7 + $0x68] sm:$0xff]
    %v686 = vld [vmem:[#allocation7 + $0x70] sm:$0xff]
    %v687 = vld [vmem:[#allocation7 + $0x78] sm:$0xff]
    %v688 = vld [vmem:[%s5] sm:$0x1]
    %v690 = vlaneseq
    %v691 = vshrl.u32 %v690, 7
    %v692 = vsub.s32 0, %v691
    %v693 = vrot.slane %v688, %v692
    %695 = vmatprep.subr.mxu0 0.0
    %696 = vmatpush1.msra.mxu0 %v672
    %697 = vmatprep.subr.mxu0 0.0
    %698 = vmatpush1.msra.mxu0 %v673
    %699 = vmatprep.subr.mxu0 0.0
    %700 = vmatpush1.msra.mxu0 %v674
    %701 = vmatprep.subr.mxu0 0.0
    %702 = vmatpush1.msra.mxu0 %v675
    %703 = vmatprep.subr.mxu0 0.0
    %704 = vmatpush1.msra.mxu0 %v676
    %705 = vmatprep.subr.mxu0 0.0
    %706 = vmatpush1.msra.mxu0 %v677
    %707 = vmatprep.subr.mxu0 0.0
    %708 = vmatpush1.msra.mxu0 %v678
    %709 = vmatprep.subr.mxu0 0.0
    %710 = vmatpush1.msra.mxu0 %v679
    %711 = vmatprep.subr.mxu0 0.0
    %712 = vmatpush1.msra.mxu0 %v680
    %713 = vmatprep.subr.mxu0 0.0
    %714 = vmatpush1.msra.mxu0 %v681
    %715 = vmatprep.subr.mxu0 0.0
    %716 = vmatpush1.msra.mxu0 %v682
    %717 = vmatprep.subr.mxu0 0.0
    %718 = vmatpush1.msra.mxu0 %v683
    %719 = vmatprep.subr.mxu0 0.0
    %720 = vmatpush1.msra.mxu0 %v684
    %721 = vmatprep.subr.mxu0 0.0
    %722 = vmatpush1.msra.mxu0 %v685
    %723 = vmatprep.subr.mxu0 0.0
    %724 = vmatpush1.msra.mxu0 %v686
    %725 = vmatprep.subr.mxu0 0.0
    %726 = vmatpush1.msra.mxu0 %v687
    %727 = vmatprep.subr.mxu0 0.0
    %728 = vmatpush1.msra.mxu0 0.0
    %729 = vmatprep.subr.mxu0 0.0
    %730 = vmatpush1.msra.mxu0 0.0
    %731 = vmatprep.subr.mxu0 0.0
    %732 = vmatpush1.msra.mxu0 0.0
    %733 = vmatprep.subr.mxu0 0.0
    %734 = vmatpush1.msra.mxu0 0.0
    %735 = vmatprep.subr.mxu0 0.0
    %736 = vmatpush1.msra.mxu0 0.0
    %737 = vmatprep.subr.mxu0 0.0
    %738 = vmatpush1.msra.mxu0 0.0
    %739 = vmatprep.subr.mxu0 0.0
    %740 = vmatpush1.msra.mxu0 0.0
    %741 = vmatprep.subr.mxu0 0.0
    %742 = vmatpush1.msra.mxu0 0.0
    %743 = vmatprep.subr.mxu0 0.0
    %744 = vmatpush1.msra.mxu0 0.0
    %745 = vmatprep.subr.mxu0 0.0
    %746 = vmatpush1.msra.mxu0 0.0
    %747 = vmatprep.subr.mxu0 0.0
    %748 = vmatpush1.msra.mxu0 0.0
    %749 = vmatprep.subr.mxu0 0.0
    %750 = vmatpush1.msra.mxu0 0.0
    %751 = vmatprep.subr.mxu0 0.0
    %752 = vmatpush1.msra.mxu0 0.0
    %753 = vmatprep.subr.mxu0 0.0
    %754 = vmatpush1.msra.mxu0 0.0
    %755 = vmatprep.subr.mxu0 0.0
    %756 = vmatpush1.msra.mxu0 0.0
    %757 = vmatprep.subr.mxu0 0.0
    %758 = vmatpush1.msra.mxu0 0.0
    %759 = vmatprep.mubr.f32.mxu0 0.0
    %760 = vmatmul.mubr.f32.gmra.mrb[0].mxu0 %v668
    %v761 = vpop.f32.mrb[0].mxu0
    %v762 = vadd.f32 %v693, %v761
    %v763 = vpop.f32.mrb[0].mxu0
    %764 = vmatprep.mubr.f32.mxu0 0.0
    %765 = vmatmul.mubr.f32.gmra.mrb[0].mxu0 %v669
    %v766 = vpop.f32.mrb[0].mxu0
    %v767 = vadd.f32 %v693, %v766
    %v768 = vpop.f32.mrb[0].mxu0
    %769 = vmatprep.mubr.f32.mxu0 0.0
    %770 = vmatmul.mubr.f32.gmra.mrb[0].mxu0 %v670
    %v771 = vpop.f32.mrb[0].mxu0
    %v772 = vadd.f32 %v693, %v771
    %v773 = vpop.f32.mrb[0].mxu0
    %774 = vmatprep.mubr.f32.mxu0 0.0
    %775 = vmatmul.mubr.f32.gmra.mrb[0].mxu0 %v671
    %v776 = vpop.f32.mrb[0].mxu0
    %v777 = vadd.f32 %v693, %v776
    %v778 = vpop.f32.mrb[0].mxu0
    %779 = vdwg.mxu0
    %780 = vst [vmem:[#allocation8] sm:$0xff] %v762
    %781 = vst [vmem:[#allocation8 + $0x8] sm:$0xff] %v767
    %782 = vst [vmem:[#allocation8 + $0x10] sm:$0xff] %v772
    %783 = vst [vmem:[#allocation8 + $0x18] sm:$0xff] %v777
    // Predicated region
    $region38: #{tpu_custom_call.1} parent=1 // pred_check
      _
    $region39: #{tpu_custom_call.1} parent=1 // pred_check_branch
      %785 = sbr.rel (0) target = $region41
    $region40: #{tpu_custom_call.1} parent=1 // pred_region
      %s787 = ssub.s32 512, 512
      %788 = vsyncadd [#allocation4], %s787
      %s789 = sshll.u32 [#allocation8], 4
      %s790 = int_to_ptr.vmem [resolvable:$true] %s789
      %795 = dma.vmem_to_hbm [thread:$0]  %s790, 512, %s6, [#allocation4], 128, 128, 8
    $region41: #{tpu_custom_call.1} parent=1 // pred_fallthru
      _
    // Predicated region
    $region42: #{tpu_custom_call.1} parent=1 // pred_check
      _
    $region43: #{tpu_custom_call.1} parent=1 // pred_check_branch
      %797 = sbr.rel (0) target = $region45
    $region44: #{tpu_custom_call.1} parent=1 // pred_region
      %798 = dma.done [#allocation4], 512
    $region45: #{tpu_custom_call.1} parent=1 // pred_fallthru
      _
    %799 = vsyncpa [#allocation3], 1
    %800 = vsyncpa [#allocation6], 1
    %801 = vsyncpa [#allocation4], 1

</llo_original>
